<compile_context>
chip_gen: v5e
topology: v5e:2x2
jax: 0.10.0
libtpu: 0.0.40
codegen_flags: <defaults>
</compile_context>

<pallas_src>
import jax
import jax.numpy as jnp
from jax import lax
from jax.experimental import pallas as pl
from jax.experimental.pallas import tpu as pltpu

_HIGH = lax.Precision.HIGHEST  # host-side weight folding + f32 reference only

# (dh, dw) offsets for the 3x3 taps, row-major; index 4 is the center tap.
_TAPS = tuple((kh - 1, kw - 1) for kh in range(3) for kw in range(3))


def _relu6(x):
    return jnp.clip(x, 0.0, 6.0)


def _make_fused_kernel(W, L, stride, residual):
    """Fused conv1+ReLU6 -> dw3x3+ReLU6 -> (subsample) -> conv2∘Linear [+res].

    Activations are (channels, L) slabs with L = Bt*H*W packed in the lane dim.
    """

    def kernel(*refs):
        if stride == 2:
            (x_ref, w1_ref, b1_ref, wt_ref, bdw_ref, m_ref,
             wf_ref, bf_ref, sub_ref, o_ref) = refs
        else:
            (x_ref, w1_ref, b1_ref, wt_ref, bdw_ref, m_ref,
             wf_ref, bf_ref, o_ref) = refs
            sub_ref = None

        # ---- conv1 (1x1) + ReLU6; grouped-conv duplication folded into the
        #      weight rows so the result is already (Cdw, L). bf16 MXU, f32 acc.
        x_f32 = x_ref[...]                                       # (Cin, L) f32
        y1 = jnp.dot(w1_ref[...], x_f32.astype(jnp.bfloat16),
                     preferred_element_type=jnp.float32)         # (Cdw, L)
        y1 = _relu6(y1 + b1_ref[...])

        # ---- depthwise 3x3, stride-1 SAME: 9 per-channel VPU FMAs on rolled
        #      (XLU) copies; hoisted boundary masks zero the wrapped lanes.
        acc = wt_ref[4] * y1                                     # center tap
        for t, (dh, dw) in enumerate(_TAPS):
            if dh == 0 and dw == 0:
                continue
            d = dh * W + dw
            rolled = pltpu.roll(y1, shift=(-d) % L, axis=1)      # out[p]=y1[p+d]
            acc = acc + wt_ref[t] * (m_ref[t] * rolled)
        y2 = _relu6(acc + bdw_ref[...]).astype(jnp.bfloat16)     # (Cdw, L)

        if stride == 2:
            # Odd-row/odd-col subsample via hoisted 0/1 selection matmul
            # (exact selection of the bf16 y2: one nonzero per column).
            # TODO(synk): strided-slice / row-strip scheme at production H/W.
            y2 = jnp.dot(y2, sub_ref[...],
                         preferred_element_type=jnp.float32).astype(jnp.bfloat16)

        # ---- conv2 (1x1) folded with the channel Linear (+ residual) ----
        out = jnp.dot(wf_ref[...], y2,
                      preferred_element_type=jnp.float32) + bf_ref[...]
        if residual:
            out = out + x_f32                                    # Cin==Cout, L==Lo
        o_ref[...] = out.astype(o_ref.dtype)

    return kernel


class MobileNetV2DownBlockPallas:
    def __init__(self, in_channels, out_channels, depth_wise_multiplier=2,
                 residual_path=False, seed=0):
        self.in_channels = in_channels
        self.out_channels = out_channels
        self.multiplier = depth_wise_multiplier
        self.residual_path = residual_path
        if residual_path:
            assert in_channels == out_channels, "residual add needs Cin == Cout"
        cdw = depth_wise_multiplier * out_channels
        self.cdw = cdw
        f32 = jnp.float32
        k = jax.random.split(jax.random.PRNGKey(seed), 8)
        # Deterministic synthetic parameters, PyTorch-shaped.
        self.w1 = 0.2 * jax.random.normal(k[0], (out_channels, in_channels, 1, 1), f32)
        self.b1 = 0.1 * jax.random.normal(k[1], (out_channels,), f32)
        self.wdw = 0.2 * jax.random.normal(k[2], (cdw, 1, 3, 3), f32)
        self.bdw = 0.1 * jax.random.normal(k[3], (cdw,), f32)
        self.w2 = 0.2 * jax.random.normal(k[4], (out_channels, cdw, 1, 1), f32)
        self.b2 = 0.1 * jax.random.normal(k[5], (out_channels,), f32)
        self.wl = 0.2 * jax.random.normal(k[6], (out_channels, out_channels), f32)
        self.bl = 0.1 * jax.random.normal(k[7], (out_channels,), f32)

        # ---- kernel-ready weights: all folding done once, at init ----
        # Grouped-conv duplication folded into conv1: dw output channel o reads
        # conv1 output channel o // M, so duplicate conv1's rows instead.
        idx = jnp.arange(cdw) // depth_wise_multiplier
        w1_mat = self.w1[:, :, 0, 0]                              # (Cout, Cin)
        self.w1_dup = w1_mat[idx].astype(jnp.bfloat16)            # (Cdw, Cin)
        self.b1_dup = self.b1[idx].reshape(cdw, 1)                # (Cdw, 1) f32
        # Depthwise per-channel tap scales (9, Cdw, 1), f32 (VPU accumulation).
        self.w_tap = jnp.transpose(self.wdw.reshape(cdw, 9)).reshape(9, cdw, 1)
        self.bdw_col = self.bdw.reshape(cdw, 1)
        # conv2 (1x1) folded with the Linear:  y = Wl(W2 z + b2) + bl
        w2_mat = self.w2[:, :, 0, 0]                              # (Cout, Cdw)
        self.w_fused = jnp.matmul(self.wl, w2_mat,
                                  precision=_HIGH).astype(jnp.bfloat16)
        self.b_fused = (jnp.matmul(self.wl, self.b2[:, None], precision=_HIGH)
                        + self.bl[:, None])                       # (Cout, 1) f32
        self._aux_cache = {}

    # Hoisted, loop-invariant constants: 3x3 boundary masks and (down path)
    # the odd/odd subsample selection matrix.  Built once per (H, W, Bt).
    def _aux(self, H, W, Ho, Wo, Bt, stride):
        key = (H, W, Ho, Wo, Bt, stride)
        if key in self._aux_cache:
            return self._aux_cache[key]
        HW = H * W
        pos = jnp.arange(HW, dtype=jnp.int32)
        fr, fc = pos // W, pos % W
        masks = []
        for dh, dw in _TAPS:
            valid = ((fr + dh >= 0) & (fr + dh < H) &
                     (fc + dw >= 0) & (fc + dw < W))
            masks.append(valid)
        masks = jnp.stack(masks).astype(jnp.float32)              # (9, HW)
        masks = jnp.tile(masks, (1, Bt)).reshape(9, 1, Bt * HW)   # (9, 1, L)
        sub = None
        if stride == 2:
            HoWo = Ho * Wo
            q = jnp.arange(HoWo, dtype=jnp.int32)
            qr, qc = q // Wo, q % Wo
            s = ((fr[:, None] == 2 * qr[None, :] + 1) &
                 (fc[:, None] == 2 * qc[None, :] + 1)).astype(jnp.float32)
            # Block-diagonal over the Bt packed images.
            sub = jnp.kron(jnp.eye(Bt, dtype=jnp.float32), s).astype(jnp.bfloat16)
        self._aux_cache[key] = (masks, sub)
        return masks, sub

    def __call__(self, x):
        # x: NCHW (B, Cin, H, W) -- same axis convention as the PyTorch module.
        B, Cin, H, W = x.shape
        assert Cin == self.in_channels
        Cout, Cdw = self.out_channels, self.cdw
        if self.residual_path:
            stride, Ho, Wo = 1, H, W
        else:
            assert H % 2 == 0 and W % 2 == 0, "down path expects even H, W"
            stride, Ho, Wo = 2, H // 2, W // 2
        HW, HoWo = H * W, Ho * Wo

        # Pack Bt images per grid step along the lane axis so the output block's
        # last dim is >= 128 (lane-dense stores; down path alone is only 64).
        Bt = min(B, max(1, pl.cdiv(128, HoWo)))
        while B % Bt:
            Bt -= 1
        G = B // Bt
        L, Lo = Bt * HW, Bt * HoWo

        # (B, Cin, H, W) -> (G, Cin, Bt*HW): tiny wrapper-side layout plumbing.
        xp = (x.reshape(G, Bt, Cin, HW)
               .transpose(0, 2, 1, 3)
               .reshape(G, Cin, L))

        masks, sub = self._aux(H, W, Ho, Wo, Bt, stride)
        kernel = _make_fused_kernel(W, L, stride, self.residual_path)

        in_specs = [
            pl.BlockSpec((None, Cin, L), lambda g: (g, 0, 0)),      # x slab
            pl.BlockSpec((Cdw, Cin), lambda g: (0, 0)),             # w1 (dup, bf16)
            pl.BlockSpec((Cdw, 1), lambda g: (0, 0)),               # b1 (dup)
            pl.BlockSpec((9, Cdw, 1), lambda g: (0, 0, 0)),         # dw tap scales
            pl.BlockSpec((Cdw, 1), lambda g: (0, 0)),               # dw bias
            pl.BlockSpec((9, 1, L), lambda g: (0, 0, 0)),           # boundary masks
            pl.BlockSpec((Cout, Cdw), lambda g: (0, 0)),            # conv2∘linear (bf16)
            pl.BlockSpec((Cout, 1), lambda g: (0, 0)),              # fused bias
        ]
        args = [xp, self.w1_dup, self.b1_dup, self.w_tap, self.bdw_col,
                masks, self.w_fused, self.b_fused]
        if stride == 2:
            in_specs.append(pl.BlockSpec((L, Lo), lambda g: (0, 0)))  # subsample sel
            args.append(sub)

        out = pl.pallas_call(
            kernel,
            out_shape=jax.ShapeDtypeStruct((G, Cout, Lo), x.dtype),
            grid_spec=pltpu.PrefetchScalarGridSpec(
                num_scalar_prefetch=0,
                grid=(G,),
                in_specs=in_specs,
                out_specs=pl.BlockSpec((None, Cout, Lo), lambda g: (g, 0, 0)),
            ),
            compiler_params=pltpu.CompilerParams(
                dimension_semantics=("parallel",)),
        )(*args)

        return (out.reshape(G, Cout, Bt, HoWo)
                   .transpose(0, 2, 1, 3)
                   .reshape(B, Cout, Ho, Wo))

    # Pure-JAX f32 reference (mirrors the PyTorch forward) for correctness.
    def reference(self, x):
        hp = lax.Precision.HIGHEST
        dn = ("NCHW", "OIHW", "NCHW")
        y = lax.conv_general_dilated(x, self.w1, (1, 1), "SAME",
                                     dimension_numbers=dn, precision=hp)
        y = y + self.b1[None, :, None, None]
        y = jnp.clip(y, 0.0, 6.0)
        if self.residual_path:
            stride, pad = (1, 1), [(1, 1), (1, 1)]
        else:
            stride, pad = (2, 2), [(0, 1), (0, 1)]  # TF-style SAME for k=3, s=2
        y = lax.conv_general_dilated(y, self.wdw, stride, pad, dimension_numbers=dn,
                                     feature_group_count=self.out_channels,
                                     precision=hp)
        y = y + self.bdw[None, :, None, None]
        y = jnp.clip(y, 0.0, 6.0)
        y = lax.conv_general_dilated(y, self.w2, (1, 1), "SAME",
                                     dimension_numbers=dn, precision=hp)
        y = y + self.b2[None, :, None, None]
        y = jnp.transpose(y, (0, 2, 3, 1))
        y = jnp.einsum("bhwc,oc->bhwo", y, self.wl, precision=hp) + self.bl
        y = jnp.transpose(y, (0, 3, 1, 2))
        if self.residual_path:
            y = y + x
        return y


if __name__ == "__main__":
    key = jax.random.PRNGKey(0)
    x = jax.random.normal(key, (2, 4, 16, 16), jnp.float32)   # NCHW like PyTorch

    # bf16 MXU compute vs f32 HIGHEST reference -> loosened tolerance (per review).
    ATOL = RTOL = 5e-2

    # Config A: residual_path=True (stride-1 depthwise + residual add).
    blk_a = MobileNetV2DownBlockPallas(4, 4, depth_wise_multiplier=2,
                                       residual_path=True, seed=1)
    out_a = jax.block_until_ready(blk_a(x))
    ref_a = jax.block_until_ready(blk_a.reference(x))
    assert out_a.shape == (2, 4, 16, 16)
    assert bool(jnp.allclose(out_a, ref_a, atol=ATOL, rtol=RTOL))

    # Config B: residual_path=False (stride-2 "down" path, TF-style SAME pad,
    # since PyTorch forbids padding='same' with stride > 1).
    blk_b = MobileNetV2DownBlockPallas(4, 8, depth_wise_multiplier=2,
                                       residual_path=False, seed=2)
    out_b = jax.block_until_ready(blk_b(x))
    ref_b = jax.block_until_ready(blk_b.reference(x))
    assert out_b.shape == (2, 8, 8, 8)
    assert bool(jnp.allclose(out_b, ref_b, atol=ATOL, rtol=RTOL))

    print("KERNEL_OK")
</pallas_src>

<mosaic_0001>
module attributes {stable_mosaic.version = 11 : i64} {
  func.func @kernel(%arg0: i32, %arg1: memref<1x4x256xf32, #tpu.memory_space<vmem>>, %arg2: memref<8x4xbf16, #tpu.memory_space<vmem>>, %arg3: memref<8x1xf32, #tpu.memory_space<vmem>>, %arg4: memref<9x8x1xf32, #tpu.memory_space<vmem>>, %arg5: memref<8x1xf32, #tpu.memory_space<vmem>>, %arg6: memref<9x1x256xf32, #tpu.memory_space<vmem>>, %arg7: memref<4x8xbf16, #tpu.memory_space<vmem>>, %arg8: memref<4x1xf32, #tpu.memory_space<vmem>>, %arg9: memref<1x4x256xf32, #tpu.memory_space<vmem>>) attributes {dimension_semantics = [#tpu.dimension_semantics<parallel>], iteration_bounds = array<i64: 2>, scalar_prefetch = 0 : i64, scratch_operands = 0 : i64, tpu.core_type = #tpu.core_type<tc>, window_params = [{transform_indices = @transform_0, window_bounds = array<i64: 1, 4, 256>}, {pipeline_mode = #tpu.pipeline_mode<synchronous>, transform_indices = @transform_1, window_bounds = array<i64: 8, 4>}, {pipeline_mode = #tpu.pipeline_mode<synchronous>, transform_indices = @transform_2, window_bounds = array<i64: 8, 1>}, {pipeline_mode = #tpu.pipeline_mode<synchronous>, transform_indices = @transform_3, window_bounds = array<i64: 9, 8, 1>}, {pipeline_mode = #tpu.pipeline_mode<synchronous>, transform_indices = @transform_4, window_bounds = array<i64: 8, 1>}, {pipeline_mode = #tpu.pipeline_mode<synchronous>, transform_indices = @transform_5, window_bounds = array<i64: 9, 1, 256>}, {pipeline_mode = #tpu.pipeline_mode<synchronous>, transform_indices = @transform_6, window_bounds = array<i64: 4, 8>}, {pipeline_mode = #tpu.pipeline_mode<synchronous>, transform_indices = @transform_7, window_bounds = array<i64: 4, 1>}, {transform_indices = @transform_8, window_bounds = array<i64: 1, 4, 256>}]} {
    %c0 = arith.constant 0 : index
    %c0_0 = arith.constant 0 : index
    %c0_1 = arith.constant 0 : index
    %0 = vector.load %arg1[%c0, %c0_0, %c0_1] : memref<1x4x256xf32, #tpu.memory_space<vmem>>, vector<1x4x256xf32>
    %1 = vector.shape_cast %0 : vector<1x4x256xf32> to vector<4x256xf32>
    %c0_2 = arith.constant 0 : index
    %c0_3 = arith.constant 0 : index
    %2 = vector.load %arg2[%c0_2, %c0_3] : memref<8x4xbf16, #tpu.memory_space<vmem>>, vector<8x4xbf16>
    %3 = arith.truncf %1 : vector<4x256xf32> to vector<4x256xbf16>
    %cst = arith.constant dense<0.000000e+00> : vector<8x256xf32>
    %4 = tpu.matmul %2, %3, %cst {dimension_numbers = #tpu.dot_dimension_numbers<[1], [0], [0], [1], [0, 0, 1, 1], [], []>} : vector<8x4xbf16>, vector<4x256xbf16>, vector<8x256xf32> -> vector<8x256xf32>
    %c0_4 = arith.constant 0 : index
    %c0_5 = arith.constant 0 : index
    %5 = vector.load %arg3[%c0_4, %c0_5] : memref<8x1xf32, #tpu.memory_space<vmem>>, vector<8x1xf32>
    %6 = vector.broadcast %5 : vector<8x1xf32> to vector<8x256xf32>
    %7 = arith.addf %4, %6 : vector<8x256xf32>
    %cst_6 = arith.constant 0.000000e+00 : f32
    %cst_7 = arith.constant 6.000000e+00 : f32
    %8 = vector.broadcast %cst_6 : f32 to vector<8x256xf32>
    %9 = arith.maximumf %8, %7 : vector<8x256xf32>
    %10 = vector.broadcast %cst_7 : f32 to vector<8x256xf32>
    %11 = arith.minimumf %10, %9 : vector<8x256xf32>
    %c4 = arith.constant 4 : index
    %c0_8 = arith.constant 0 : index
    %c0_9 = arith.constant 0 : index
    %12 = vector.load %arg4[%c4, %c0_8, %c0_9] : memref<9x8x1xf32, #tpu.memory_space<vmem>>, vector<1x8x1xf32>
    %13 = vector.shape_cast %12 : vector<1x8x1xf32> to vector<8x1xf32>
    %14 = vector.broadcast %13 : vector<8x1xf32> to vector<8x256xf32>
    %15 = arith.mulf %14, %11 : vector<8x256xf32>
    %c17_i32 = arith.constant 17 : i32
    %16 = tpu.dynamic_rotate %11 by %c17_i32 dim 1 : vector<8x256xf32>, i32 -> vector<8x256xf32>
    %c0_10 = arith.constant 0 : index
    %c0_11 = arith.constant 0 : index
    %c0_12 = arith.constant 0 : index
    %17 = vector.load %arg4[%c0_10, %c0_11, %c0_12] : memref<9x8x1xf32, #tpu.memory_space<vmem>>, vector<1x8x1xf32>
    %18 = vector.shape_cast %17 : vector<1x8x1xf32> to vector<8x1xf32>
    %c0_13 = arith.constant 0 : index
    %c0_14 = arith.constant 0 : index
    %c0_15 = arith.constant 0 : index
    %19 = vector.load %arg6[%c0_13, %c0_14, %c0_15] : memref<9x1x256xf32, #tpu.memory_space<vmem>>, vector<1x1x256xf32>
    %20 = vector.shape_cast %19 : vector<1x1x256xf32> to vector<1x256xf32>
    %21 = vector.broadcast %20 : vector<1x256xf32> to vector<8x256xf32>
    %22 = arith.mulf %21, %16 : vector<8x256xf32>
    %23 = vector.broadcast %18 : vector<8x1xf32> to vector<8x256xf32>
    %24 = arith.mulf %23, %22 : vector<8x256xf32>
    %25 = arith.addf %15, %24 : vector<8x256xf32>
    %c16_i32 = arith.constant 16 : i32
    %26 = tpu.dynamic_rotate %11 by %c16_i32 dim 1 : vector<8x256xf32>, i32 -> vector<8x256xf32>
    %c1 = arith.constant 1 : index
    %c0_16 = arith.constant 0 : index
    %c0_17 = arith.constant 0 : index
    %27 = vector.load %arg4[%c1, %c0_16, %c0_17] : memref<9x8x1xf32, #tpu.memory_space<vmem>>, vector<1x8x1xf32>
    %28 = vector.shape_cast %27 : vector<1x8x1xf32> to vector<8x1xf32>
    %c1_18 = arith.constant 1 : index
    %c0_19 = arith.constant 0 : index
    %c0_20 = arith.constant 0 : index
    %29 = vector.load %arg6[%c1_18, %c0_19, %c0_20] : memref<9x1x256xf32, #tpu.memory_space<vmem>>, vector<1x1x256xf32>
    %30 = vector.shape_cast %29 : vector<1x1x256xf32> to vector<1x256xf32>
    %31 = vector.broadcast %30 : vector<1x256xf32> to vector<8x256xf32>
    %32 = arith.mulf %31, %26 : vector<8x256xf32>
    %33 = vector.broadcast %28 : vector<8x1xf32> to vector<8x256xf32>
    %34 = arith.mulf %33, %32 : vector<8x256xf32>
    %35 = arith.addf %25, %34 : vector<8x256xf32>
    %c15_i32 = arith.constant 15 : i32
    %36 = tpu.dynamic_rotate %11 by %c15_i32 dim 1 : vector<8x256xf32>, i32 -> vector<8x256xf32>
    %c2 = arith.constant 2 : index
    %c0_21 = arith.constant 0 : index
    %c0_22 = arith.constant 0 : index
    %37 = vector.load %arg4[%c2, %c0_21, %c0_22] : memref<9x8x1xf32, #tpu.memory_space<vmem>>, vector<1x8x1xf32>
    %38 = vector.shape_cast %37 : vector<1x8x1xf32> to vector<8x1xf32>
    %c2_23 = arith.constant 2 : index
    %c0_24 = arith.constant 0 : index
    %c0_25 = arith.constant 0 : index
    %39 = vector.load %arg6[%c2_23, %c0_24, %c0_25] : memref<9x1x256xf32, #tpu.memory_space<vmem>>, vector<1x1x256xf32>
    %40 = vector.shape_cast %39 : vector<1x1x256xf32> to vector<1x256xf32>
    %41 = vector.broadcast %40 : vector<1x256xf32> to vector<8x256xf32>
    %42 = arith.mulf %41, %36 : vector<8x256xf32>
    %43 = vector.broadcast %38 : vector<8x1xf32> to vector<8x256xf32>
    %44 = arith.mulf %43, %42 : vector<8x256xf32>
    %45 = arith.addf %35, %44 : vector<8x256xf32>
    %c1_i32 = arith.constant 1 : i32
    %46 = tpu.dynamic_rotate %11 by %c1_i32 dim 1 : vector<8x256xf32>, i32 -> vector<8x256xf32>
    %c3 = arith.constant 3 : index
    %c0_26 = arith.constant 0 : index
    %c0_27 = arith.constant 0 : index
    %47 = vector.load %arg4[%c3, %c0_26, %c0_27] : memref<9x8x1xf32, #tpu.memory_space<vmem>>, vector<1x8x1xf32>
    %48 = vector.shape_cast %47 : vector<1x8x1xf32> to vector<8x1xf32>
    %c3_28 = arith.constant 3 : index
    %c0_29 = arith.constant 0 : index
    %c0_30 = arith.constant 0 : index
    %49 = vector.load %arg6[%c3_28, %c0_29, %c0_30] : memref<9x1x256xf32, #tpu.memory_space<vmem>>, vector<1x1x256xf32>
    %50 = vector.shape_cast %49 : vector<1x1x256xf32> to vector<1x256xf32>
    %51 = vector.broadcast %50 : vector<1x256xf32> to vector<8x256xf32>
    %52 = arith.mulf %51, %46 : vector<8x256xf32>
    %53 = vector.broadcast %48 : vector<8x1xf32> to vector<8x256xf32>
    %54 = arith.mulf %53, %52 : vector<8x256xf32>
    %55 = arith.addf %45, %54 : vector<8x256xf32>
    %c255_i32 = arith.constant 255 : i32
    %56 = tpu.dynamic_rotate %11 by %c255_i32 dim 1 : vector<8x256xf32>, i32 -> vector<8x256xf32>
    %c5 = arith.constant 5 : index
    %c0_31 = arith.constant 0 : index
    %c0_32 = arith.constant 0 : index
    %57 = vector.load %arg4[%c5, %c0_31, %c0_32] : memref<9x8x1xf32, #tpu.memory_space<vmem>>, vector<1x8x1xf32>
    %58 = vector.shape_cast %57 : vector<1x8x1xf32> to vector<8x1xf32>
    %c5_33 = arith.constant 5 : index
    %c0_34 = arith.constant 0 : index
    %c0_35 = arith.constant 0 : index
    %59 = vector.load %arg6[%c5_33, %c0_34, %c0_35] : memref<9x1x256xf32, #tpu.memory_space<vmem>>, vector<1x1x256xf32>
    %60 = vector.shape_cast %59 : vector<1x1x256xf32> to vector<1x256xf32>
    %61 = vector.broadcast %60 : vector<1x256xf32> to vector<8x256xf32>
    %62 = arith.mulf %61, %56 : vector<8x256xf32>
    %63 = vector.broadcast %58 : vector<8x1xf32> to vector<8x256xf32>
    %64 = arith.mulf %63, %62 : vector<8x256xf32>
    %65 = arith.addf %55, %64 : vector<8x256xf32>
    %c241_i32 = arith.constant 241 : i32
    %66 = tpu.dynamic_rotate %11 by %c241_i32 dim 1 : vector<8x256xf32>, i32 -> vector<8x256xf32>
    %c6 = arith.constant 6 : index
    %c0_36 = arith.constant 0 : index
    %c0_37 = arith.constant 0 : index
    %67 = vector.load %arg4[%c6, %c0_36, %c0_37] : memref<9x8x1xf32, #tpu.memory_space<vmem>>, vector<1x8x1xf32>
    %68 = vector.shape_cast %67 : vector<1x8x1xf32> to vector<8x1xf32>
    %c6_38 = arith.constant 6 : index
    %c0_39 = arith.constant 0 : index
    %c0_40 = arith.constant 0 : index
    %69 = vector.load %arg6[%c6_38, %c0_39, %c0_40] : memref<9x1x256xf32, #tpu.memory_space<vmem>>, vector<1x1x256xf32>
    %70 = vector.shape_cast %69 : vector<1x1x256xf32> to vector<1x256xf32>
    %71 = vector.broadcast %70 : vector<1x256xf32> to vector<8x256xf32>
    %72 = arith.mulf %71, %66 : vector<8x256xf32>
    %73 = vector.broadcast %68 : vector<8x1xf32> to vector<8x256xf32>
    %74 = arith.mulf %73, %72 : vector<8x256xf32>
    %75 = arith.addf %65, %74 : vector<8x256xf32>
    %c240_i32 = arith.constant 240 : i32
    %76 = tpu.dynamic_rotate %11 by %c240_i32 dim 1 : vector<8x256xf32>, i32 -> vector<8x256xf32>
    %c7 = arith.constant 7 : index
    %c0_41 = arith.constant 0 : index
    %c0_42 = arith.constant 0 : index
    %77 = vector.load %arg4[%c7, %c0_41, %c0_42] : memref<9x8x1xf32, #tpu.memory_space<vmem>>, vector<1x8x1xf32>
    %78 = vector.shape_cast %77 : vector<1x8x1xf32> to vector<8x1xf32>
    %c7_43 = arith.constant 7 : index
    %c0_44 = arith.constant 0 : index
    %c0_45 = arith.constant 0 : index
    %79 = vector.load %arg6[%c7_43, %c0_44, %c0_45] : memref<9x1x256xf32, #tpu.memory_space<vmem>>, vector<1x1x256xf32>
    %80 = vector.shape_cast %79 : vector<1x1x256xf32> to vector<1x256xf32>
    %81 = vector.broadcast %80 : vector<1x256xf32> to vector<8x256xf32>
    %82 = arith.mulf %81, %76 : vector<8x256xf32>
    %83 = vector.broadcast %78 : vector<8x1xf32> to vector<8x256xf32>
    %84 = arith.mulf %83, %82 : vector<8x256xf32>
    %85 = arith.addf %75, %84 : vector<8x256xf32>
    %c239_i32 = arith.constant 239 : i32
    %86 = tpu.dynamic_rotate %11 by %c239_i32 dim 1 : vector<8x256xf32>, i32 -> vector<8x256xf32>
    %c8 = arith.constant 8 : index
    %c0_46 = arith.constant 0 : index
    %c0_47 = arith.constant 0 : index
    %87 = vector.load %arg4[%c8, %c0_46, %c0_47] : memref<9x8x1xf32, #tpu.memory_space<vmem>>, vector<1x8x1xf32>
    %88 = vector.shape_cast %87 : vector<1x8x1xf32> to vector<8x1xf32>
    %c8_48 = arith.constant 8 : index
    %c0_49 = arith.constant 0 : index
    %c0_50 = arith.constant 0 : index
    %89 = vector.load %arg6[%c8_48, %c0_49, %c0_50] : memref<9x1x256xf32, #tpu.memory_space<vmem>>, vector<1x1x256xf32>
    %90 = vector.shape_cast %89 : vector<1x1x256xf32> to vector<1x256xf32>
    %91 = vector.broadcast %90 : vector<1x256xf32> to vector<8x256xf32>
    %92 = arith.mulf %91, %86 : vector<8x256xf32>
    %93 = vector.broadcast %88 : vector<8x1xf32> to vector<8x256xf32>
    %94 = arith.mulf %93, %92 : vector<8x256xf32>
    %95 = arith.addf %85, %94 : vector<8x256xf32>
    %c0_51 = arith.constant 0 : index
    %c0_52 = arith.constant 0 : index
    %96 = vector.load %arg5[%c0_51, %c0_52] : memref<8x1xf32, #tpu.memory_space<vmem>>, vector<8x1xf32>
    %97 = vector.broadcast %96 : vector<8x1xf32> to vector<8x256xf32>
    %98 = arith.addf %95, %97 : vector<8x256xf32>
    %cst_53 = arith.constant 0.000000e+00 : f32
    %cst_54 = arith.constant 6.000000e+00 : f32
    %99 = vector.broadcast %cst_53 : f32 to vector<8x256xf32>
    %100 = arith.maximumf %99, %98 : vector<8x256xf32>
    %101 = vector.broadcast %cst_54 : f32 to vector<8x256xf32>
    %102 = arith.minimumf %101, %100 : vector<8x256xf32>
    %103 = arith.truncf %102 : vector<8x256xf32> to vector<8x256xbf16>
    %c0_55 = arith.constant 0 : index
    %c0_56 = arith.constant 0 : index
    %104 = vector.load %arg7[%c0_55, %c0_56] : memref<4x8xbf16, #tpu.memory_space<vmem>>, vector<4x8xbf16>
    %cst_57 = arith.constant dense<0.000000e+00> : vector<4x256xf32>
    %105 = tpu.matmul %104, %103, %cst_57 {dimension_numbers = #tpu.dot_dimension_numbers<[1], [0], [0], [1], [0, 0, 1, 1], [], []>} : vector<4x8xbf16>, vector<8x256xbf16>, vector<4x256xf32> -> vector<4x256xf32>
    %c0_58 = arith.constant 0 : index
    %c0_59 = arith.constant 0 : index
    %106 = vector.load %arg8[%c0_58, %c0_59] : memref<4x1xf32, #tpu.memory_space<vmem>>, vector<4x1xf32>
    %107 = vector.broadcast %106 : vector<4x1xf32> to vector<4x256xf32>
    %108 = arith.addf %105, %107 : vector<4x256xf32>
    %109 = arith.addf %108, %1 : vector<4x256xf32>
    %c0_60 = arith.constant 0 : index
    %c0_61 = arith.constant 0 : index
    %c0_62 = arith.constant 0 : index
    %110 = vector.load %arg9[%c0_60, %c0_61, %c0_62] : memref<1x4x256xf32, #tpu.memory_space<vmem>>, vector<1x4x256xf32>
    %111 = vector.shape_cast %110 : vector<1x4x256xf32> to vector<4x256xf32>
    %112 = vector.shape_cast %109 : vector<4x256xf32> to vector<1x4x256xf32>
    tpu.vector_store %arg9[%c0_60, %c0_61, %c0_62], %112 {strides = array<i32>} : memref<1x4x256xf32, #tpu.memory_space<vmem>>, vector<1x4x256xf32>,
    return
  }
  func.func @transform_0(%arg0: i32) -> (i32, i32, i32) {
    %c0_i32 = arith.constant 0 : i32
    %c0_i32_0 = arith.constant 0 : i32
    %c0_i32_1 = arith.constant 0 : i32
    return %arg0, %c0_i32, %c0_i32_0 : i32, i32, i32
  }
  func.func @transform_1(%arg0: i32) -> (i32, i32) {
    %c0_i32 = arith.constant 0 : i32
    %c0_i32_0 = arith.constant 0 : i32
    %c0_i32_1 = arith.constant 0 : i32
    return %c0_i32, %c0_i32_0 : i32, i32
  }
  func.func @transform_2(%arg0: i32) -> (i32, i32) {
    %c0_i32 = arith.constant 0 : i32
    %c0_i32_0 = arith.constant 0 : i32
    %c0_i32_1 = arith.constant 0 : i32
    return %c0_i32, %c0_i32_0 : i32, i32
  }
  func.func @transform_3(%arg0: i32) -> (i32, i32, i32) {
    %c0_i32 = arith.constant 0 : i32
    %c0_i32_0 = arith.constant 0 : i32
    %c0_i32_1 = arith.constant 0 : i32
    %c0_i32_2 = arith.constant 0 : i32
    return %c0_i32, %c0_i32_0, %c0_i32_1 : i32, i32, i32
  }
  func.func @transform_4(%arg0: i32) -> (i32, i32) {
    %c0_i32 = arith.constant 0 : i32
    %c0_i32_0 = arith.constant 0 : i32
    %c0_i32_1 = arith.constant 0 : i32
    return %c0_i32, %c0_i32_0 : i32, i32
  }
  func.func @transform_5(%arg0: i32) -> (i32, i32, i32) {
    %c0_i32 = arith.constant 0 : i32
    %c0_i32_0 = arith.constant 0 : i32
    %c0_i32_1 = arith.constant 0 : i32
    %c0_i32_2 = arith.constant 0 : i32
    return %c0_i32, %c0_i32_0, %c0_i32_1 : i32, i32, i32
  }
  func.func @transform_6(%arg0: i32) -> (i32, i32) {
    %c0_i32 = arith.constant 0 : i32
    %c0_i32_0 = arith.constant 0 : i32
    %c0_i32_1 = arith.constant 0 : i32
    return %c0_i32, %c0_i32_0 : i32, i32
  }
  func.func @transform_7(%arg0: i32) -> (i32, i32) {
    %c0_i32 = arith.constant 0 : i32
    %c0_i32_0 = arith.constant 0 : i32
    %c0_i32_1 = arith.constant 0 : i32
    return %c0_i32, %c0_i32_0 : i32, i32
  }
  func.func @transform_8(%arg0: i32) -> (i32, i32, i32) {
    %c0_i32 = arith.constant 0 : i32
    %c0_i32_0 = arith.constant 0 : i32
    %c0_i32_1 = arith.constant 0 : i32
    return %arg0, %c0_i32, %c0_i32_0 : i32, i32, i32
  }
}

</mosaic_0001>

<llo_original>
// kernel: tpu_custom_call.1
$region0: #{tpu_custom_call.1}
  #allocation0 [shape = 'u32[]', space=smem, size = 0x4, offset = 0x4, fixed_abs, tag = 'smem constant byte address 0x4 - core index']
  #allocation1 [shape = 'u32[72,128]{1,0:T(1,128)}', space=vmem, size = 0x9000, scoped, tag = 'internal scratch']
  %s0 = inlined_call_operand.vmem [shape: f32[2,4,256], index: 0, kind: input, shape index: {}]
  %s1 = inlined_call_operand.vmem [shape: bf16[8,4], index: 1, kind: input, shape index: {}]
  %s2 = inlined_call_operand.vmem [shape: f32[8,1], index: 2, kind: input, shape index: {}]
  %s3 = inlined_call_operand.vmem [shape: f32[9,8,1], index: 3, kind: input, shape index: {}]
  %s4 = inlined_call_operand.vmem [shape: f32[8,1], index: 4, kind: input, shape index: {}]
  %s5 = inlined_call_operand.vmem [shape: f32[9,1,256], index: 5, kind: input, shape index: {}]
  %s6 = inlined_call_operand.vmem [shape: bf16[4,8], index: 6, kind: input, shape index: {}]
  %s7 = inlined_call_operand.vmem [shape: f32[4,1], index: 7, kind: input, shape index: {}]
  %s8 = inlined_call_operand.hbm [shape: f32[2,4,256], index: 8, kind: output, shape index: {}]
  %s9 = sld [smem:[#allocation0]]
  $region65: #{tpu_custom_call.1} parent=0
    _
  %s11 = ssub.s32 1, %s9
  %s12 = scalar_select 0, %s11, %s9
  $region1: #{tpu_custom_call.1} parent=0
    #allocation2 [shape = 'u8[8192]{0}', space=vmem, size = 0x2000, scoped, tag = 'output window, operand 0']
    #allocation3 [shape = 's32[2]{0}', space=sflag, size = 0x8, scoped, tag = 'scoped memory for tpu_custom_call.1']
    %13 = vsyncpa [#allocation3], 0
    %s14 = scalar_lea.sflag [#allocation3], 1
    %15 = vsyncpa %s14, 0
    loop: start=0, step=1, limit=4
    $region2: #{tpu_custom_call.1} parent=1 // loop_pre_header
      _
    $region3: #{tpu_custom_call.1} parent=1 // loop_header
      %s17 = sphi 0, %s21
      %p18 = scmp.ge.s32.totalorder %s17, 4
      %s27 = sphi 0, %s29
      %s30 = sphi 0, %s27
      %s31 = sphi 0, %s30
      %s47 = sphi 0, %s31
      %s51 = sphi 0, %s51
      %s53 = sphi 0, %s51
      %s54 = sphi 0, %s53
      %s68 = sphi 0, %s54
      %s72 = sphi 0, %s72
      %s74 = sphi 0, %s72
      %s75 = sphi 0, %s74
      %s89 = sphi 0, %s75
      %s93 = sphi 0, %s93
      %s95 = sphi 0, %s93
      %s96 = sphi 0, %s95
      %s110 = sphi 0, %s96
      %s114 = sphi 0, %s114
      %s116 = sphi 0, %s114
      %s117 = sphi 0, %s116
      %s131 = sphi 0, %s117
      %s135 = sphi 0, %s135
      %s137 = sphi 0, %s135
      %s138 = sphi 0, %s137
      %s152 = sphi 0, %s138
      %s156 = sphi 0, %s156
      %s158 = sphi 0, %s156
      %s159 = sphi 0, %s158
      %s173 = sphi 0, %s159
      %s177 = sphi 0, %s177
      %s179 = sphi 0, %s177
      %s180 = sphi 0, %s179
      %s194 = sphi 0, %s180
      %s200 = sphi 0, %s202
      %s203 = sphi 0, %s200
      %s204 = sphi 0, %s203
      %s220 = sphi 0, %s204
    $region4: #{tpu_custom_call.1} parent=1 // loop_header_branch
      %20 = sbr.rel (%p18) target = $region8
    $region5: #{tpu_custom_call.1} parent=1 // loop_body
      %s22 = ssub.s32 %s17, 1
      %s23 = ssub.s32 %s17, 2
      %s24 = sadd.s32 %s17, 1
      %s25 = ssub.s32 %s17, %s24
      %p26 = scmp.eq.s32.totalorder %s25, 0
      %s28 = sadd.s32 %s27, 1
      %s29 = scalar_select %p26, %s27, %s28
      %p32 = pneg %p26
      %p33 = scmp.eq.s32.totalorder %s17, 1
      %p34 = por %p32, %p33
      %p35 = scmp.ne.s32.totalorder %s27, %s30
      %p36 = scmp.eq.s32.totalorder %s17, 0
      %p37 = por %p35, %p36
      %p38 = scmp.ne.s32.totalorder %s27, %s30
      %p39 = scmp.eq.s32.totalorder %s22, 1
      %p40 = por %p38, %p39
      %p41 = scmp.ne.s32.totalorder %s30, %s31
      %p42 = scmp.eq.s32.totalorder %s22, 0
      %p43 = por %p41, %p42
      %p44 = scmp.ne.s32.totalorder %s30, %s31
      %p45 = scmp.eq.s32.totalorder %s23, 1
      %p46 = por %p44, %p45
      %p48 = scmp.ne.s32.totalorder %s31, %s47
      %p49 = scmp.eq.s32.totalorder %s23, 0
      %p50 = por %p48, %p49
      %s52 = sadd.s32 %s51, 1
      %p55 = scmp.eq.s32.totalorder %s17, 1
      %p56 = scmp.ne.s32.totalorder %s51, %s53
      %p57 = scmp.eq.s32.totalorder %s17, 0
      %p58 = por %p56, %p57
      %p59 = scmp.ne.s32.totalorder %s51, %s53
      %p60 = scmp.eq.s32.totalorder %s22, 1
      %p61 = por %p59, %p60
      %p62 = scmp.ne.s32.totalorder %s53, %s54
      %p63 = scmp.eq.s32.totalorder %s22, 0
      %p64 = por %p62, %p63
      %p65 = scmp.ne.s32.totalorder %s53, %s54
      %p66 = scmp.eq.s32.totalorder %s23, 1
      %p67 = por %p65, %p66
      %p69 = scmp.ne.s32.totalorder %s54, %s68
      %p70 = scmp.eq.s32.totalorder %s23, 0
      %p71 = por %p69, %p70
      %s73 = sadd.s32 %s72, 1
      %p76 = scmp.eq.s32.totalorder %s17, 1
      %p77 = scmp.ne.s32.totalorder %s72, %s74
      %p78 = scmp.eq.s32.totalorder %s17, 0
      %p79 = por %p77, %p78
      %p80 = scmp.ne.s32.totalorder %s72, %s74
      %p81 = scmp.eq.s32.totalorder %s22, 1
      %p82 = por %p80, %p81
      %p83 = scmp.ne.s32.totalorder %s74, %s75
      %p84 = scmp.eq.s32.totalorder %s22, 0
      %p85 = por %p83, %p84
      %p86 = scmp.ne.s32.totalorder %s74, %s75
      %p87 = scmp.eq.s32.totalorder %s23, 1
      %p88 = por %p86, %p87
      %p90 = scmp.ne.s32.totalorder %s75, %s89
      %p91 = scmp.eq.s32.totalorder %s23, 0
      %p92 = por %p90, %p91
      %s94 = sadd.s32 %s93, 1
      %p97 = scmp.eq.s32.totalorder %s17, 1
      %p98 = scmp.ne.s32.totalorder %s93, %s95
      %p99 = scmp.eq.s32.totalorder %s17, 0
      %p100 = por %p98, %p99
      %p101 = scmp.ne.s32.totalorder %s93, %s95
      %p102 = scmp.eq.s32.totalorder %s22, 1
      %p103 = por %p101, %p102
      %p104 = scmp.ne.s32.totalorder %s95, %s96
      %p105 = scmp.eq.s32.totalorder %s22, 0
      %p106 = por %p104, %p105
      %p107 = scmp.ne.s32.totalorder %s95, %s96
      %p108 = scmp.eq.s32.totalorder %s23, 1
      %p109 = por %p107, %p108
      %p111 = scmp.ne.s32.totalorder %s96, %s110
      %p112 = scmp.eq.s32.totalorder %s23, 0
      %p113 = por %p111, %p112
      %s115 = sadd.s32 %s114, 1
      %p118 = scmp.eq.s32.totalorder %s17, 1
      %p119 = scmp.ne.s32.totalorder %s114, %s116
      %p120 = scmp.eq.s32.totalorder %s17, 0
      %p121 = por %p119, %p120
      %p122 = scmp.ne.s32.totalorder %s114, %s116
      %p123 = scmp.eq.s32.totalorder %s22, 1
      %p124 = por %p122, %p123
      %p125 = scmp.ne.s32.totalorder %s116, %s117
      %p126 = scmp.eq.s32.totalorder %s22, 0
      %p127 = por %p125, %p126
      %p128 = scmp.ne.s32.totalorder %s116, %s117
      %p129 = scmp.eq.s32.totalorder %s23, 1
      %p130 = por %p128, %p129
      %p132 = scmp.ne.s32.totalorder %s117, %s131
      %p133 = scmp.eq.s32.totalorder %s23, 0
      %p134 = por %p132, %p133
      %s136 = sadd.s32 %s135, 1
      %p139 = scmp.eq.s32.totalorder %s17, 1
      %p140 = scmp.ne.s32.totalorder %s135, %s137
      %p141 = scmp.eq.s32.totalorder %s17, 0
      %p142 = por %p140, %p141
      %p143 = scmp.ne.s32.totalorder %s135, %s137
      %p144 = scmp.eq.s32.totalorder %s22, 1
      %p145 = por %p143, %p144
      %p146 = scmp.ne.s32.totalorder %s137, %s138
      %p147 = scmp.eq.s32.totalorder %s22, 0
      %p148 = por %p146, %p147
      %p149 = scmp.ne.s32.totalorder %s137, %s138
      %p150 = scmp.eq.s32.totalorder %s23, 1
      %p151 = por %p149, %p150
      %p153 = scmp.ne.s32.totalorder %s138, %s152
      %p154 = scmp.eq.s32.totalorder %s23, 0
      %p155 = por %p153, %p154
      %s157 = sadd.s32 %s156, 1
      %p160 = scmp.eq.s32.totalorder %s17, 1
      %p161 = scmp.ne.s32.totalorder %s156, %s158
      %p162 = scmp.eq.s32.totalorder %s17, 0
      %p163 = por %p161, %p162
      %p164 = scmp.ne.s32.totalorder %s156, %s158
      %p165 = scmp.eq.s32.totalorder %s22, 1
      %p166 = por %p164, %p165
      %p167 = scmp.ne.s32.totalorder %s158, %s159
      %p168 = scmp.eq.s32.totalorder %s22, 0
      %p169 = por %p167, %p168
      %p170 = scmp.ne.s32.totalorder %s158, %s159
      %p171 = scmp.eq.s32.totalorder %s23, 1
      %p172 = por %p170, %p171
      %p174 = scmp.ne.s32.totalorder %s159, %s173
      %p175 = scmp.eq.s32.totalorder %s23, 0
      %p176 = por %p174, %p175
      %s178 = sadd.s32 %s177, 1
      %p181 = scmp.eq.s32.totalorder %s17, 1
      %p182 = scmp.ne.s32.totalorder %s177, %s179
      %p183 = scmp.eq.s32.totalorder %s17, 0
      %p184 = por %p182, %p183
      %p185 = scmp.ne.s32.totalorder %s177, %s179
      %p186 = scmp.eq.s32.totalorder %s22, 1
      %p187 = por %p185, %p186
      %p188 = scmp.ne.s32.totalorder %s179, %s180
      %p189 = scmp.eq.s32.totalorder %s22, 0
      %p190 = por %p188, %p189
      %p191 = scmp.ne.s32.totalorder %s179, %s180
      %p192 = scmp.eq.s32.totalorder %s23, 1
      %p193 = por %p191, %p192
      %p195 = scmp.ne.s32.totalorder %s180, %s194
      %p196 = scmp.eq.s32.totalorder %s23, 0
      %p197 = por %p195, %p196
      %s198 = ssub.s32 %s17, %s24
      %p199 = scmp.eq.s32.totalorder %s198, 0
      %s201 = sadd.s32 %s200, 1
      %s202 = scalar_select %p199, %s200, %s201
      %p205 = pneg %p199
      %p206 = scmp.eq.s32.totalorder %s17, 1
      %p207 = por %p205, %p206
      %p208 = scmp.ne.s32.totalorder %s200, %s203
      %p209 = scmp.eq.s32.totalorder %s17, 0
      %p210 = por %p208, %p209
      %p211 = scmp.ne.s32.totalorder %s200, %s203
      %p212 = scmp.eq.s32.totalorder %s22, 1
      %p213 = por %p211, %p212
      %p214 = scmp.ne.s32.totalorder %s203, %s204
      %p215 = scmp.eq.s32.totalorder %s22, 0
      %p216 = por %p214, %p215
      %p217 = scmp.ne.s32.totalorder %s203, %s204
      %p218 = scmp.eq.s32.totalorder %s23, 1
      %p219 = por %p217, %p218
      %p221 = scmp.ne.s32.totalorder %s204, %s220
      %p222 = scmp.eq.s32.totalorder %s23, 0
      %p223 = por %p221, %p222
      %p224 = scmp.le.s32.totalorder 1, %s17
      %p225 = scmp.lt.s32.totalorder %s17, 3
      %p226 = pnand %p224, %p225
      %p227 = pneg %p226
      // Predicated region
      $region9: #{tpu_custom_call.1} parent=5 // pred_check
        _
      $region10: #{tpu_custom_call.1} parent=5 // pred_check_branch
        %229 = sbr.rel (%p226) target = $region12
      $region11: #{tpu_custom_call.1} parent=5 // pred_region
        %s230 = ssub.s32 %s17, 1
        // Predicated region
        $region13: #{tpu_custom_call.1} parent=11 // pred_check
          %p231 = pneg %p64
        $region14: #{tpu_custom_call.1} parent=11 // pred_check_branch
          %233 = sbr.rel (%p231) target = $region16
        $region15: #{tpu_custom_call.1} parent=11 // pred_region
          _
        $region16: #{tpu_custom_call.1} parent=11 // pred_fallthru
          _
        // Predicated region
        $region17: #{tpu_custom_call.1} parent=11 // pred_check
          %p234 = pneg %p85
        $region18: #{tpu_custom_call.1} parent=11 // pred_check_branch
          %236 = sbr.rel (%p234) target = $region20
        $region19: #{tpu_custom_call.1} parent=11 // pred_region
          _
        $region20: #{tpu_custom_call.1} parent=11 // pred_fallthru
          _
        // Predicated region
        $region21: #{tpu_custom_call.1} parent=11 // pred_check
          %p237 = pneg %p106
        $region22: #{tpu_custom_call.1} parent=11 // pred_check_branch
          %239 = sbr.rel (%p237) target = $region24
        $region23: #{tpu_custom_call.1} parent=11 // pred_region
          _
        $region24: #{tpu_custom_call.1} parent=11 // pred_fallthru
          _
        // Predicated region
        $region25: #{tpu_custom_call.1} parent=11 // pred_check
          %p240 = pneg %p127
        $region26: #{tpu_custom_call.1} parent=11 // pred_check_branch
          %242 = sbr.rel (%p240) target = $region28
        $region27: #{tpu_custom_call.1} parent=11 // pred_region
          _
        $region28: #{tpu_custom_call.1} parent=11 // pred_fallthru
          _
        // Predicated region
        $region29: #{tpu_custom_call.1} parent=11 // pred_check
          %p243 = pneg %p148
        $region30: #{tpu_custom_call.1} parent=11 // pred_check_branch
          %245 = sbr.rel (%p243) target = $region32
        $region31: #{tpu_custom_call.1} parent=11 // pred_region
          _
        $region32: #{tpu_custom_call.1} parent=11 // pred_fallthru
          _
        // Predicated region
        $region33: #{tpu_custom_call.1} parent=11 // pred_check
          %p246 = pneg %p169
        $region34: #{tpu_custom_call.1} parent=11 // pred_check_branch
          %248 = sbr.rel (%p246) target = $region36
        $region35: #{tpu_custom_call.1} parent=11 // pred_region
          _
        $region36: #{tpu_custom_call.1} parent=11 // pred_fallthru
          _
        // Predicated region
        $region37: #{tpu_custom_call.1} parent=11 // pred_check
          %p249 = pneg %p190
        $region38: #{tpu_custom_call.1} parent=11 // pred_check_branch
          %251 = sbr.rel (%p249) target = $region40
        $region39: #{tpu_custom_call.1} parent=11 // pred_region
          _
        $region40: #{tpu_custom_call.1} parent=11 // pred_fallthru
          _
      $region12: #{tpu_custom_call.1} parent=5 // pred_fallthru
        _
      %p252 = scmp.lt.s32.totalorder %s17, 2
      // Predicated region
      $region41: #{tpu_custom_call.1} parent=5 // pred_check
        %p253 = pneg %p252
      $region42: #{tpu_custom_call.1} parent=5 // pred_check_branch
        %255 = sbr.rel (%p253) target = $region44
      $region43: #{tpu_custom_call.1} parent=5 // pred_region
        // Predicated region
        $region45: #{tpu_custom_call.1} parent=43 // pred_check
          %p256 = pneg %p37
        $region46: #{tpu_custom_call.1} parent=43 // pred_check_branch
          %258 = sbr.rel (%p256) target = $region48
        $region47: #{tpu_custom_call.1} parent=43 // pred_region
          %p259 = scmp.lt.s32.totalorder %s17, 1
          %s260 = scalar_select %p259, %s17, 1
          %s261 = smul.addr %s260, 2
          %s262 = smul.addr %s261, 4
          %s263 = scalar_lea.vmem %s0, %s262
        $region48: #{tpu_custom_call.1} parent=43 // pred_fallthru
          _
      $region44: #{tpu_custom_call.1} parent=5 // pred_fallthru
        _
      %p264 = scmp.le.s32.totalorder 1, %s17
      %p265 = scmp.lt.s32.totalorder %s17, 3
      %p266 = pnand %p264, %p265
      %p267 = pneg %p266
      // Predicated region
      $region49: #{tpu_custom_call.1} parent=5 // pred_check
        _
      $region50: #{tpu_custom_call.1} parent=5 // pred_check_branch
        %269 = sbr.rel (%p266) target = $region52
      $region51: #{tpu_custom_call.1} parent=5 // pred_region
        %s270 = ssub.s32 %s17, 1
        %p271 = scmp.lt.s32.totalorder %s22, 1
        %s272 = scalar_select %p271, %s22, 1
        %s273 = smul.addr %s272, 2
        %s274 = smul.addr %s273, 4
        %s275 = scalar_lea.vmem %s0, %s274
        %p276 = pneg %p43
        %p277 = pneg %p40
        %p278 = pneg %p64
        %p279 = pneg %p61
        %p280 = pneg %p85
        %p281 = pneg %p82
        %p282 = pneg %p106
        %p283 = pneg %p103
        %p284 = pneg %p127
        %p285 = pneg %p124
        %p286 = pneg %p148
        %p287 = pneg %p145
        %p288 = pneg %p169
        %p289 = pneg %p166
        %p290 = pneg %p190
        %p291 = pneg %p187
        %p292 = pneg %p216
        %p293 = pneg %p213
        %s294 = sand.u32 %s203, 1
        %s295 = scalar_lea.sflag [#allocation3], %s294
        %s296 = sand.u32 %s203, 1
        %s297 = smul.addr %s296, 8
        %s298 = scalar_lea.vmem [#allocation2], %s297
        %p299 = scmp.lt.s32.totalorder %s22, 1
        %s300 = scalar_select %p299, %s22, 1
        %s301 = smul.addr %s300, 2
        %s302 = smul.addr %s301, 4
        %s303 = scalar_lea.vmem %s0, %s302
        %v305 = vld [vmem:[%s303] sm:$0xff]
        %v306 = vld [vmem:[%s1] sm:$0xf]
        %308 = vst [vmem:[#allocation1] ss:$2 sm:$0xff] %v305
        %v309 = vld.sshfl [vmem:[#allocation1] sm:$0xff pattern:$0x75316420]
        %v310 = vld.sshfl [vmem:[#allocation1 + $0x8] sm:$0xff pattern:$0x75316420]
        %v313 = vpack.c.bf16 %v309, %v309
        %v314 = vpack.c.bf16 %v310, %v310
        %v315 = vld [vmem:[%s2] sm:$0xff]
        %317 = vset.pattern.permute.xlu0 0
        %318 = vperm.xlu0 %317, %v315
        %v319 = vpop.permute.xlu0 %318
        %vm321 = vcmask 31744
        %v323 = vsel %vm321, %v306, 0
        %vm325 = vcmask 1041408
        %v327 = vsel %vm325, %v313, 0
        %v330 = vsel %vm325, %v314, 0
        %332 = vmatpush.bf16.msra.mxu0 0
        %333 = vmatpush.bf16.msra.mxu0 0
        %334 = vmatpush.bf16.msra.mxu0 0
        %335 = vmatpush.bf16.msra.mxu0 0
        %336 = vmatpush.bf16.msra.mxu0 0
        %337 = vmatpush.bf16.msra.mxu0 0
        %338 = vmatpush.bf16.msra.mxu0 0
        %339 = vmatpush.bf16.msra.mxu0 %v327
        %340 = vmatmul.bf16.gmra.mxu0 %v323
        %v341 = vpop.f32.mrf.mxu0
        %v342 = vadd.f32 %v319, %v341
        %v343 = vpop.f32.mrf.mxu0
        %344 = vdwg.mxu0
        %345 = vmatpush.bf16.msra.mxu0 0
        %346 = vmatpush.bf16.msra.mxu0 0
        %347 = vmatpush.bf16.msra.mxu0 0
        %348 = vmatpush.bf16.msra.mxu0 0
        %349 = vmatpush.bf16.msra.mxu0 0
        %350 = vmatpush.bf16.msra.mxu0 0
        %351 = vmatpush.bf16.msra.mxu0 0
        %352 = vmatpush.bf16.msra.mxu0 %v330
        %353 = vmatmul.bf16.gmra.mxu0 %v323
        %v354 = vpop.f32.mrf.mxu0
        %v355 = vadd.f32 %v319, %v354
        %v356 = vpop.f32.mrf.mxu0
        %357 = vdwg.mxu0
        %v358 = vmax.f32 %v342, 0.0
        %v359 = vmax.f32 %v355, 0.0
        %v360 = vmin.f32 %v358, 6.0
        %v361 = vmin.f32 %v359, 6.0
        %s362 = scalar_lea.vmem %s3, 32
        %v363 = vld [vmem:[%s362] sm:$0xff]
        %365 = vset.pattern.permute.xlu0 0
        %366 = vperm.xlu0 %365, %v363
        %v367 = vpop.permute.xlu0 %366
        %v369 = vmul.f32 %v367, %v360
        %v370 = vmul.f32 %v367, %v361
        %371 = vrot.lane.b32.xlu0 %v360, 17
        %v372 = vpop.permute.xlu0 %371
        %373 = vrot.lane.b32.xlu0 %v361, 17
        %v374 = vpop.permute.xlu0 %373
        %v375 = vlaneseq
        %v376 = vand.u32 %v375, 127
        %vm377 = vcmp.lt.s32.totalorder %v376, 17
        %v378 = vsel %vm377, %v372, %v374
        %v379 = vsel %vm377, %v374, %v372
        %v380 = vld [vmem:[%s3] sm:$0xff]
        %v381 = vld [vmem:[%s5] sm:$0x3]
        %v383 = vperm.slane %v381, 0
        %v384 = vperm.slane %v381, 1
        %v387 = vmul.f32 %v383, %v379
        %v388 = vmul.f32 %v384, %v378
        %390 = vset.pattern.permute.xlu0 0
        %391 = vperm.xlu0 %390, %v380
        %v392 = vpop.permute.xlu0 %391
        %v394 = vmul.f32 %v392, %v387
        %v395 = vmul.f32 %v392, %v388
        %v396 = vadd.f32 %v369, %v394
        %v397 = vadd.f32 %v370, %v395
        %398 = vrot.lane.b32.xlu0 %v360, 16
        %v399 = vpop.permute.xlu0 %398
        %400 = vrot.lane.b32.xlu0 %v361, 16
        %v401 = vpop.permute.xlu0 %400
        %vm402 = vcmp.lt.s32.totalorder %v376, 16
        %v403 = vsel %vm402, %v399, %v401
        %v404 = vsel %vm402, %v401, %v399
        %s405 = scalar_lea.vmem %s3, 8
        %v406 = vld [vmem:[%s405] sm:$0xff]
        %s407 = scalar_lea.vmem %s5, 2
        %v408 = vld [vmem:[%s407] sm:$0x3]
        %v410 = vperm.slane %v408, 0
        %v411 = vperm.slane %v408, 1
        %v414 = vmul.f32 %v410, %v404
        %v415 = vmul.f32 %v411, %v403
        %417 = vset.pattern.permute.xlu0 0
        %418 = vperm.xlu0 %417, %v406
        %v419 = vpop.permute.xlu0 %418
        %v421 = vmul.f32 %v419, %v414
        %v422 = vmul.f32 %v419, %v415
        %v423 = vadd.f32 %v396, %v421
        %v424 = vadd.f32 %v397, %v422
        %425 = vrot.lane.b32.xlu0 %v360, 15
        %v426 = vpop.permute.xlu0 %425
        %427 = vrot.lane.b32.xlu0 %v361, 15
        %v428 = vpop.permute.xlu0 %427
        %vm429 = vcmp.lt.s32.totalorder %v376, 15
        %v430 = vsel %vm429, %v426, %v428
        %v431 = vsel %vm429, %v428, %v426
        %s432 = scalar_lea.vmem %s3, 16
        %v433 = vld [vmem:[%s432] sm:$0xff]
        %s434 = scalar_lea.vmem %s5, 4
        %v435 = vld [vmem:[%s434] sm:$0x3]
        %v437 = vperm.slane %v435, 0
        %v438 = vperm.slane %v435, 1
        %v441 = vmul.f32 %v437, %v431
        %v442 = vmul.f32 %v438, %v430
        %444 = vset.pattern.permute.xlu0 0
        %445 = vperm.xlu0 %444, %v433
        %v446 = vpop.permute.xlu0 %445
        %v448 = vmul.f32 %v446, %v441
        %v449 = vmul.f32 %v446, %v442
        %v450 = vadd.f32 %v423, %v448
        %v451 = vadd.f32 %v424, %v449
        %452 = vrot.lane.b32.xlu0 %v360, 1
        %v453 = vpop.permute.xlu0 %452
        %454 = vrot.lane.b32.xlu0 %v361, 1
        %v455 = vpop.permute.xlu0 %454
        %vm456 = vcmp.lt.s32.totalorder %v376, 1
        %v457 = vsel %vm456, %v453, %v455
        %v458 = vsel %vm456, %v455, %v453
        %s459 = scalar_lea.vmem %s3, 24
        %v460 = vld [vmem:[%s459] sm:$0xff]
        %s461 = scalar_lea.vmem %s5, 6
        %v462 = vld [vmem:[%s461] sm:$0x3]
        %v464 = vperm.slane %v462, 0
        %v465 = vperm.slane %v462, 1
        %v468 = vmul.f32 %v464, %v458
        %v469 = vmul.f32 %v465, %v457
        %471 = vset.pattern.permute.xlu0 0
        %472 = vperm.xlu0 %471, %v460
        %v473 = vpop.permute.xlu0 %472
        %v475 = vmul.f32 %v473, %v468
        %v476 = vmul.f32 %v473, %v469
        %v477 = vadd.f32 %v450, %v475
        %v478 = vadd.f32 %v451, %v476
        %479 = vrot.lane.b32.xlu0 %v360, 127
        %v480 = vpop.permute.xlu0 %479
        %481 = vrot.lane.b32.xlu0 %v361, 127
        %v482 = vpop.permute.xlu0 %481
        %vm483 = vcmp.lt.s32.totalorder %v376, 127
        %v484 = vsel %vm483, %v480, %v482
        %v485 = vsel %vm483, %v482, %v480
        %s486 = scalar_lea.vmem %s3, 40
        %v487 = vld [vmem:[%s486] sm:$0xff]
        %s488 = scalar_lea.vmem %s5, 10
        %v489 = vld [vmem:[%s488] sm:$0x3]
        %v491 = vperm.slane %v489, 0
        %v492 = vperm.slane %v489, 1
        %v495 = vmul.f32 %v491, %v484
        %v496 = vmul.f32 %v492, %v485
        %498 = vset.pattern.permute.xlu0 0
        %499 = vperm.xlu0 %498, %v487
        %v500 = vpop.permute.xlu0 %499
        %v502 = vmul.f32 %v500, %v495
        %v503 = vmul.f32 %v500, %v496
        %v504 = vadd.f32 %v477, %v502
        %v505 = vadd.f32 %v478, %v503
        %506 = vrot.lane.b32.xlu0 %v360, 113
        %v507 = vpop.permute.xlu0 %506
        %508 = vrot.lane.b32.xlu0 %v361, 113
        %v509 = vpop.permute.xlu0 %508
        %vm510 = vcmp.lt.s32.totalorder %v376, 113
        %v511 = vsel %vm510, %v507, %v509
        %v512 = vsel %vm510, %v509, %v507
        %s513 = scalar_lea.vmem %s3, 48
        %v514 = vld [vmem:[%s513] sm:$0xff]
        %s515 = scalar_lea.vmem %s5, 12
        %v516 = vld [vmem:[%s515] sm:$0x3]
        %v518 = vperm.slane %v516, 0
        %v519 = vperm.slane %v516, 1
        %v522 = vmul.f32 %v518, %v511
        %v523 = vmul.f32 %v519, %v512
        %525 = vset.pattern.permute.xlu0 0
        %526 = vperm.xlu0 %525, %v514
        %v527 = vpop.permute.xlu0 %526
        %v529 = vmul.f32 %v527, %v522
        %v530 = vmul.f32 %v527, %v523
        %v531 = vadd.f32 %v504, %v529
        %v532 = vadd.f32 %v505, %v530
        %533 = vrot.lane.b32.xlu0 %v360, 112
        %v534 = vpop.permute.xlu0 %533
        %535 = vrot.lane.b32.xlu0 %v361, 112
        %v536 = vpop.permute.xlu0 %535
        %vm537 = vcmp.lt.s32.totalorder %v376, 112
        %v538 = vsel %vm537, %v534, %v536
        %v539 = vsel %vm537, %v536, %v534
        %s540 = scalar_lea.vmem %s3, 56
        %v541 = vld [vmem:[%s540] sm:$0xff]
        %s542 = scalar_lea.vmem %s5, 14
        %v543 = vld [vmem:[%s542] sm:$0x3]
        %v545 = vperm.slane %v543, 0
        %v546 = vperm.slane %v543, 1
        %v549 = vmul.f32 %v545, %v538
        %v550 = vmul.f32 %v546, %v539
        %552 = vset.pattern.permute.xlu0 0
        %553 = vperm.xlu0 %552, %v541
        %v554 = vpop.permute.xlu0 %553
        %v556 = vmul.f32 %v554, %v549
        %v557 = vmul.f32 %v554, %v550
        %v558 = vadd.f32 %v531, %v556
        %v559 = vadd.f32 %v532, %v557
        %560 = vrot.lane.b32.xlu0 %v360, 111
        %v561 = vpop.permute.xlu0 %560
        %562 = vrot.lane.b32.xlu0 %v361, 111
        %v563 = vpop.permute.xlu0 %562
        %vm564 = vcmp.lt.s32.totalorder %v376, 111
        %v565 = vsel %vm564, %v561, %v563
        %v566 = vsel %vm564, %v563, %v561
        %s567 = scalar_lea.vmem %s3, 64
        %v568 = vld [vmem:[%s567] sm:$0xff]
        %s569 = scalar_lea.vmem %s5, 16
        %v570 = vld [vmem:[%s569] sm:$0x3]
        %v572 = vperm.slane %v570, 0
        %v573 = vperm.slane %v570, 1
        %v576 = vmul.f32 %v572, %v565
        %v577 = vmul.f32 %v573, %v566
        %579 = vset.pattern.permute.xlu0 0
        %580 = vperm.xlu0 %579, %v568
        %v581 = vpop.permute.xlu0 %580
        %v583 = vmul.f32 %v581, %v576
        %v584 = vmul.f32 %v581, %v577
        %v585 = vadd.f32 %v558, %v583
        %v586 = vadd.f32 %v559, %v584
        %v587 = vld [vmem:[%s4] sm:$0xff]
        %589 = vset.pattern.permute.xlu0 0
        %590 = vperm.xlu0 %589, %v587
        %v591 = vpop.permute.xlu0 %590
        %v593 = vadd.f32 %v585, %v591
        %v594 = vadd.f32 %v586, %v591
        %v595 = vmax.f32 %v593, 0.0
        %v596 = vmax.f32 %v594, 0.0
        %v597 = vmin.f32 %v595, 6.0
        %v598 = vmin.f32 %v596, 6.0
        %v599 = vpack.c.bf16 %v597, %v597
        %v600 = vpack.c.bf16 %v598, %v598
        %v601 = vld [vmem:[%s6] sm:$0x3]
        %v602 = vld [vmem:[%s7] sm:$0xf]
        %604 = vset.pattern.permute.xlu0 0
        %605 = vperm.xlu0 %604, %v602
        %v606 = vpop.permute.xlu0 %605
        %vm608 = vcmask 64512
        %v610 = vsel %vm608, %v601, 0
        %vm612 = vcmask 1043456
        %v614 = vsel %vm612, %v599, 0
        %v617 = vsel %vm612, %v600, 0
        %619 = vmatpush.bf16.msra.mxu0 0
        %620 = vmatpush.bf16.msra.mxu0 0
        %621 = vmatpush.bf16.msra.mxu0 0
        %622 = vmatpush.bf16.msra.mxu0 0
        %623 = vmatpush.bf16.msra.mxu0 0
        %624 = vmatpush.bf16.msra.mxu0 0
        %625 = vmatpush.bf16.msra.mxu0 0
        %626 = vmatpush.bf16.msra.mxu0 %v614
        %627 = vmatmul.bf16.gmra.mxu0 %v610
        %v628 = vpop.f32.mrf.mxu0
        %v629 = vadd.f32 %v606, %v628
        %v630 = vpop.f32.mrf.mxu0
        %631 = vdwg.mxu0
        %632 = vmatpush.bf16.msra.mxu0 0
        %633 = vmatpush.bf16.msra.mxu0 0
        %634 = vmatpush.bf16.msra.mxu0 0
        %635 = vmatpush.bf16.msra.mxu0 0
        %636 = vmatpush.bf16.msra.mxu0 0
        %637 = vmatpush.bf16.msra.mxu0 0
        %638 = vmatpush.bf16.msra.mxu0 0
        %639 = vmatpush.bf16.msra.mxu0 %v617
        %640 = vmatmul.bf16.gmra.mxu0 %v610
        %v641 = vpop.f32.mrf.mxu0
        %v642 = vadd.f32 %v606, %v641
        %v643 = vpop.f32.mrf.mxu0
        %644 = vdwg.mxu0
        %645 = vst [vmem:[#allocation1] ss:$2 sm:$0xff] %v305
        %v646 = vld.sshfl [vmem:[#allocation1] sm:$0xff pattern:$0x75316420]
        %v647 = vld.sshfl [vmem:[#allocation1 + $0x8] sm:$0xff pattern:$0x75316420]
        %v650 = vadd.f32 %v629, %v646
        %v651 = vadd.f32 %v642, %v647
        %v654 = vrot.slane %v651, 4
        %v655 = vsel %vm612, %v650, %v654
        %657 = vst [vmem:[%s298] sm:$0xff] %v655
        %s658 = sand.u32 %s203, 1
        %s659 = scalar_lea.sflag [#allocation3], %s658
        %s660 = sand.u32 %s203, 1
        %s661 = smul.addr %s660, 8
        %s662 = scalar_lea.vmem [#allocation2], %s661
        // Predicated region
        $region53: #{tpu_custom_call.1} parent=51 // pred_check
          %p663 = pneg %p213
        $region54: #{tpu_custom_call.1} parent=51 // pred_check_branch
          %665 = sbr.rel (%p663) target = $region56
        $region55: #{tpu_custom_call.1} parent=51 // pred_region
          %667 = vsyncadd %s659, 0
          %s668 = smul.addr %s22, 2
          %s669 = smul.addr %s668, 4
          %s670 = scalar_lea.hbm %s8, %s669
          %s672 = sshll.u32 %s662, 4
          %s673 = int_to_ptr.vmem [resolvable:$true] %s672
          %s674 = sshll.u32 %s670, 4
          %s675 = int_to_ptr.hbm [resolvable:$true] %s674
          %677 = dma.vmem_to_hbm [thread:$0]  %s673, 128, %s675, %s659
        $region56: #{tpu_custom_call.1} parent=51 // pred_fallthru
          _
      $region52: #{tpu_custom_call.1} parent=5 // pred_fallthru
        _
      %p678 = scmp.le.s32.totalorder 2, %s17
      // Predicated region
      $region57: #{tpu_custom_call.1} parent=5 // pred_check
        %p679 = pneg %p678
      $region58: #{tpu_custom_call.1} parent=5 // pred_check_branch
        %681 = sbr.rel (%p679) target = $region60
      $region59: #{tpu_custom_call.1} parent=5 // pred_region
        %s682 = ssub.s32 %s17, 2
        // Predicated region
        $region61: #{tpu_custom_call.1} parent=59 // pred_check
          %p683 = pneg %p219
        $region62: #{tpu_custom_call.1} parent=59 // pred_check_branch
          %685 = sbr.rel (%p683) target = $region64
        $region63: #{tpu_custom_call.1} parent=59 // pred_region
          %s686 = sand.u32 %s204, 1
          %s687 = scalar_lea.sflag [#allocation3], %s686
          %s688 = sand.u32 %s204, 1
          %s689 = smul.addr %s688, 8
          %s690 = scalar_lea.vmem [#allocation2], %s689
          %692 = dma.done %s687, 128
        $region64: #{tpu_custom_call.1} parent=59 // pred_fallthru
          _
      $region60: #{tpu_custom_call.1} parent=5 // pred_fallthru
        _
    $region6: #{tpu_custom_call.1} parent=1 // loop_footer
      %s21 = sadd.s32 1, %s17
    $region7: #{tpu_custom_call.1} parent=1 // loop_footer_branch
      %16 = sbr.rel target = $region3
    $region8: #{tpu_custom_call.1} parent=1 // loop_exit
      _
    %693 = vsyncpa [#allocation3], 1
    %s694 = scalar_lea.sflag [#allocation3], 1
    %695 = vsyncpa %s694, 1

</llo_original>
